<compile_context>
chip_gen: v5e
topology: v5e:2x2
jax: 0.10.0
libtpu: 0.0.40
codegen_flags: <defaults>
</compile_context>

<pallas_src>
import math
import jax
import jax.numpy as jnp
from jax.experimental import pallas as pl
from jax.experimental.pallas import tpu as pltpu

D_MODEL = 32
NUM_HEADS = 4
HEAD_DIM = D_MODEL // NUM_HEADS          # 8
SCALE = 1.0 / math.sqrt(HEAD_DIM)
LANE_PACK = 4                            # batch rows packed per 128-lane vreg
LANES = LANE_PACK * D_MODEL              # 128


def _round_up(x, m):
    return (x + m - 1) // m * m


def _mha_kernel(xt_ref, xe_ref, w_ref, b_ref, o_ref):
    """Lane-packed 4-head attention for one batch-group tile.

    xt_ref: (TG, 128)      queries, 4 batch rows packed along lanes
    xe_ref: (S, TG, 128)   keys/values source (batch-minor, lane groups match q)
    w_ref : (128, 640)     [Wq*scale | Wk | Wv | Wo | SegBcast]  (4x block-diag)
    b_ref : (1, 512)       [bq*scale | bk | bv | bo]             (4x replicated)
    o_ref : (TG, 128)
    """
    L = LANES
    S, TG = xe_ref.shape[0], xe_ref.shape[1]

    xt = xt_ref[...]                                    # (TG, 128)
    xe = xe_ref[...].reshape(S * TG, L)                 # (S*TG, 128)

    # Full-width MXU projections (K = 128).  Softmax scale is pre-folded into
    # Wq / bq; K and V are fused into one (128, 256) slab.
    q = jnp.dot(xt, w_ref[:, 0:L],
                preferred_element_type=jnp.float32) + b_ref[:, 0:L]          # (TG, 128)
    kv = jnp.dot(xe, w_ref[:, L:3 * L],
                 preferred_element_type=jnp.float32) + b_ref[:, L:3 * L]     # (S*TG, 256)
    k = kv[:, 0:L].reshape(S, TG, L)                    # (S, TG, 128)
    v = kv[:, L:2 * L].reshape(S, TG, L)                # (S, TG, 128)

    # Per-(batch-row, head) scores replicated across each head's 8 lanes via one
    # 128x128 0/1 segment-sum-and-broadcast matmul (precomputed on host).
    prod = q[None, :, :] * k                            # (S, TG, 128) leading-axis bcast
    s_rep = jnp.dot(prod.reshape(S * TG, L), w_ref[:, 4 * L:5 * L],
                    preferred_element_type=jnp.float32).reshape(S, TG, L)

    # Stable softmax over keys: leading-axis reductions are pure VPU work.
    m = jnp.max(s_rep, axis=0, keepdims=True)           # (1, TG, 128)
    p = jnp.exp(s_rep - m)                              # (S, TG, 128)
    l_sum = jnp.sum(p, axis=0, keepdims=True)           # (1, TG, 128)
    r = pl.reciprocal(l_sum, approx=True)               # EUP vrcp (own VLIW slot)
    r = r * (2.0 - l_sum * r)                           # one Newton step -> ~f32 accuracy
    p = p * r

    # Weighted value reduction over keys (elementwise + leading-axis sum).
    ctx = jnp.sum(p * v, axis=0)                        # (TG, 128)

    # Output projection; (TG, 128) store is lane-dense -> unmasked vst.
    out = jnp.dot(ctx, w_ref[:, 3 * L:4 * L],
                  preferred_element_type=jnp.float32) + b_ref[:, 3 * L:4 * L]
    o_ref[...] = out.astype(o_ref.dtype)


def extract_variable_dependence(x_external, x_target, packed_params):
    """x_external: (B, S, D), x_target: (B, 1, D) -> (B, 1, D)."""
    B, S, D = x_external.shape
    assert D == D_MODEL and x_target.shape == (B, 1, D)
    w_all, b_all = packed_params                        # (128, 640), (1, 512)

    G = LANE_PACK
    NGr = pl.cdiv(B, G)                                 # batch groups actually needed
    if NGr <= 8:
        # Tiny batch: single grid step, block == full array (no (8,128) constraint).
        TG, NG = NGr, NGr
    else:
        # Working set ~ 8 live f32 copies of an (S*TG, 128) slab = 4 KiB * S * TG.
        # Keep it under ~10 MiB so the v5e 16 MiB scoped-VMEM default and v7x's
        # 64 MiB physical VMEM are safe without raising vmem_limit_bytes.
        cap = max(8, ((10 * 1024 * 1024) // (4096 * max(S, 1))) // 8 * 8)
        # >= 2 grid steps so both v7x TensorCores get work on the "parallel" axis.
        TG = min(32, cap, max(8, _round_up(pl.cdiv(NGr, 2), 8)))
        NG = _round_up(NGr, TG)
    nb = NG // TG
    Bp = NG * G

    # Lane-pack 4 batch rows into the 128-lane axis (layout plumbing done in XLA):
    #   xt_p[g, j*32 + d]    = x_target[4g + j, 0, d]
    #   xe_p[s, g, j*32 + d] = x_external[4g + j, s, d]
    xt = x_target.reshape(B, D)
    xe = x_external
    if Bp != B:
        xt = jnp.pad(xt, ((0, Bp - B), (0, 0)))
        xe = jnp.pad(xe, ((0, Bp - B), (0, 0), (0, 0)))
    xt_p = xt.reshape(NG, G * D)
    xe_p = xe.reshape(NG, G, S, D).transpose(2, 0, 1, 3).reshape(S, NG, G * D)

    out = pl.pallas_call(
        _mha_kernel,
        out_shape=jax.ShapeDtypeStruct((NG, LANES), x_target.dtype),
        grid_spec=pltpu.PrefetchScalarGridSpec(
            num_scalar_prefetch=0,
            grid=(nb,),
            in_specs=[
                pl.BlockSpec((TG, LANES), lambda i: (i, 0)),         # packed queries
                pl.BlockSpec((S, TG, LANES), lambda i: (0, i, 0)),   # packed keys/values
                pl.BlockSpec((LANES, 5 * LANES), lambda i: (0, 0)),  # weights (resident)
                pl.BlockSpec((1, 4 * LANES), lambda i: (0, 0)),      # biases (resident)
            ],
            out_specs=pl.BlockSpec((TG, LANES), lambda i: (i, 0)),
        ),
        compiler_params=pltpu.CompilerParams(
            dimension_semantics=("parallel",)),
    )(xt_p, xe_p, w_all, b_all)

    return out.reshape(Bp, D)[:B].reshape(B, 1, D)


def init_params(key, d_model):
    """Deterministic synthetic MHA parameters.

    Weights are stored pre-transposed, i.e. y = x @ W + b, equivalent to
    nn.MultiheadAttention's in_proj_weight[...].T / out_proj.weight.T.
    """
    ks = jax.random.split(key, 8)
    std = 1.0 / math.sqrt(d_model)
    wq = jax.random.normal(ks[0], (d_model, d_model), jnp.float32) * std
    wk = jax.random.normal(ks[1], (d_model, d_model), jnp.float32) * std
    wv = jax.random.normal(ks[2], (d_model, d_model), jnp.float32) * std
    wo = jax.random.normal(ks[3], (d_model, d_model), jnp.float32) * std
    bq = jax.random.normal(ks[4], (1, d_model), jnp.float32) * 0.02
    bk = jax.random.normal(ks[5], (1, d_model), jnp.float32) * 0.02
    bv = jax.random.normal(ks[6], (1, d_model), jnp.float32) * 0.02
    bo = jax.random.normal(ks[7], (1, d_model), jnp.float32) * 0.02
    return (wq, bq, wk, bk, wv, bv, wo, bo)


def pack_params(params):
    """One-time host-side packing for the lane-packed kernel.

    Builds 4x block-diagonal 128x128 weight slabs (softmax scale folded into
    Wq/bq), 4x lane-replicated 128-wide biases, and the 128x128 0/1
    segment-sum-and-broadcast matrix (hoisted out of the kernel body).
    """
    wq, bq, wk, bk, wv, bv, wo, bo = params
    G = LANE_PACK
    eye = jnp.eye(G, dtype=jnp.float32)

    def blkdiag(w):                     # (D, D) -> (G*D, G*D) block diagonal
        return jnp.kron(eye, w)

    def rep(b):                         # (1, D) -> (1, G*D)
        return jnp.tile(b, (1, G))

    lanes = jnp.arange(LANES)
    seg = (lanes[:, None] // HEAD_DIM == lanes[None, :] // HEAD_DIM)
    seg = seg.astype(jnp.float32)       # (128, 128) segment sum + broadcast

    w_all = jnp.concatenate(
        [blkdiag(wq * SCALE), blkdiag(wk), blkdiag(wv), blkdiag(wo), seg],
        axis=1)                                               # (128, 640)
    b_all = jnp.concatenate(
        [rep(bq * SCALE), rep(bk), rep(bv), rep(bo)], axis=1)  # (1, 512)
    return w_all, b_all


def reference_mha(x_external, x_target, params):
    """Pure-JAX reference of the same multi-head attention (for verification)."""
    wq, bq, wk, bk, wv, bv, wo, bo = params
    B, S, D = x_external.shape
    q = x_target @ wq + bq          # (B, 1, D)
    k = x_external @ wk + bk        # (B, S, D)
    v = x_external @ wv + bv        # (B, S, D)
    qh = q.reshape(B, 1, NUM_HEADS, HEAD_DIM).transpose(0, 2, 1, 3)
    kh = k.reshape(B, S, NUM_HEADS, HEAD_DIM).transpose(0, 2, 1, 3)
    vh = v.reshape(B, S, NUM_HEADS, HEAD_DIM).transpose(0, 2, 1, 3)
    s = jnp.einsum("bhqd,bhkd->bhqk", qh * SCALE, kh)
    p = jax.nn.softmax(s, axis=-1)
    o = jnp.einsum("bhqk,bhkd->bhqd", p, vh)
    o = o.transpose(0, 2, 1, 3).reshape(B, 1, D)
    return o @ wo + bo


if __name__ == "__main__":
    key = jax.random.PRNGKey(0)
    k_ext, k_tgt, k_par = jax.random.split(key, 3)
    params = init_params(k_par, D_MODEL)
    packed = pack_params(params)

    # Small primary case (single grid step): B=2, M-1=8, d_model=32.
    B, M_MINUS_1 = 2, 8
    x_external = jax.random.normal(k_ext, (B, M_MINUS_1, D_MODEL), jnp.float32)
    x_target = jax.random.normal(k_tgt, (B, 1, D_MODEL), jnp.float32)
    out = jax.block_until_ready(
        extract_variable_dependence(x_external, x_target, packed))
    ref = reference_mha(x_external, x_target, params)
    assert out.shape == (B, 1, D_MODEL)
    # Slightly looser than 1e-5: approx-recip + Newton and different MXU
    # accumulation order vs. the reference einsums.
    assert jnp.allclose(out, ref, atol=1e-4, rtol=1e-4), "mismatch vs JAX reference"

    # Larger batch exercising the multi-step ("parallel") grid path.
    B2 = 40
    x_external2 = jax.random.normal(k_ext, (B2, M_MINUS_1, D_MODEL), jnp.float32)
    x_target2 = jax.random.normal(k_tgt, (B2, 1, D_MODEL), jnp.float32)
    out2 = jax.block_until_ready(
        extract_variable_dependence(x_external2, x_target2, packed))
    ref2 = reference_mha(x_external2, x_target2, params)
    assert out2.shape == (B2, 1, D_MODEL)
    assert jnp.allclose(out2, ref2, atol=1e-4, rtol=1e-4), "mismatch vs JAX reference (tiled)"

    print("KERNEL_OK")
</pallas_src>

<mosaic_0001>
module attributes {stable_mosaic.version = 11 : i64} {
  func.func @_mha_kernel(%arg0: i32, %arg1: memref<1x128xf32, #tpu.memory_space<vmem>>, %arg2: memref<8x1x128xf32, #tpu.memory_space<vmem>>, %arg3: memref<128x640xf32, #tpu.memory_space<vmem>>, %arg4: memref<1x512xf32, #tpu.memory_space<vmem>>, %arg5: memref<1x128xf32, #tpu.memory_space<vmem>>) attributes {dimension_semantics = [#tpu.dimension_semantics<parallel>], iteration_bounds = array<i64: 1>, scalar_prefetch = 0 : i64, scratch_operands = 0 : i64, tpu.core_type = #tpu.core_type<tc>, window_params = [{transform_indices = @transform_0, window_bounds = array<i64: 1, 128>}, {transform_indices = @transform_1, window_bounds = array<i64: 8, 1, 128>}, {pipeline_mode = #tpu.pipeline_mode<synchronous>, transform_indices = @transform_2, window_bounds = array<i64: 128, 640>}, {pipeline_mode = #tpu.pipeline_mode<synchronous>, transform_indices = @transform_3, window_bounds = array<i64: 1, 512>}, {transform_indices = @transform_4, window_bounds = array<i64: 1, 128>}]} {
    %c0 = arith.constant 0 : index
    %c0_0 = arith.constant 0 : index
    %0 = vector.load %arg1[%c0, %c0_0] : memref<1x128xf32, #tpu.memory_space<vmem>>, vector<1x128xf32>
    %c0_1 = arith.constant 0 : index
    %c0_2 = arith.constant 0 : index
    %c0_3 = arith.constant 0 : index
    %1 = vector.load %arg2[%c0_1, %c0_2, %c0_3] : memref<8x1x128xf32, #tpu.memory_space<vmem>>, vector<8x1x128xf32>
    %2 = vector.shape_cast %1 : vector<8x1x128xf32> to vector<8x128xf32>
    %c0_4 = arith.constant 0 : index
    %c0_5 = arith.constant 0 : index
    %3 = vector.load %arg3[%c0_4, %c0_5] : memref<128x640xf32, #tpu.memory_space<vmem>>, vector<128x128xf32>
    %cst = arith.constant dense<0.000000e+00> : vector<1x128xf32>
    %4 = tpu.matmul %0, %3, %cst {dimension_numbers = #tpu.dot_dimension_numbers<[1], [0], [0], [1], [0, 0, 1, 1], [], []>} : vector<1x128xf32>, vector<128x128xf32>, vector<1x128xf32> -> vector<1x128xf32>
    %c0_6 = arith.constant 0 : index
    %c0_7 = arith.constant 0 : index
    %5 = vector.load %arg4[%c0_6, %c0_7] : memref<1x512xf32, #tpu.memory_space<vmem>>, vector<1x128xf32>
    %6 = arith.addf %4, %5 : vector<1x128xf32>
    %c0_8 = arith.constant 0 : index
    %c128 = arith.constant 128 : index
    %7 = vector.load %arg3[%c0_8, %c128] : memref<128x640xf32, #tpu.memory_space<vmem>>, vector<128x256xf32>
    %cst_9 = arith.constant dense<0.000000e+00> : vector<8x256xf32>
    %8 = tpu.matmul %2, %7, %cst_9 {dimension_numbers = #tpu.dot_dimension_numbers<[1], [0], [0], [1], [0, 0, 1, 1], [], []>} : vector<8x128xf32>, vector<128x256xf32>, vector<8x256xf32> -> vector<8x256xf32>
    %c0_10 = arith.constant 0 : index
    %c128_11 = arith.constant 128 : index
    %9 = vector.load %arg4[%c0_10, %c128_11] : memref<1x512xf32, #tpu.memory_space<vmem>>, vector<1x256xf32>
    %10 = vector.broadcast %9 : vector<1x256xf32> to vector<8x256xf32>
    %11 = arith.addf %8, %10 : vector<8x256xf32>
    %12 = vector.extract_strided_slice %11 {offsets = [0, 0], sizes = [8, 128], strides = [1, 1]} : vector<8x256xf32> to vector<8x128xf32>
    %13 = vector.shape_cast %12 : vector<8x128xf32> to vector<8x1x128xf32>
    %14 = vector.extract_strided_slice %11 {offsets = [0, 128], sizes = [8, 128], strides = [1, 1]} : vector<8x256xf32> to vector<8x128xf32>
    %15 = vector.shape_cast %14 : vector<8x128xf32> to vector<8x1x128xf32>
    %16 = vector.shape_cast %6 : vector<1x128xf32> to vector<1x1x128xf32>
    %17 = vector.broadcast %16 : vector<1x1x128xf32> to vector<8x1x128xf32>
    %18 = arith.mulf %17, %13 : vector<8x1x128xf32>
    %19 = vector.shape_cast %18 : vector<8x1x128xf32> to vector<8x128xf32>
    %c0_12 = arith.constant 0 : index
    %c512 = arith.constant 512 : index
    %20 = vector.load %arg3[%c0_12, %c512] : memref<128x640xf32, #tpu.memory_space<vmem>>, vector<128x128xf32>
    %cst_13 = arith.constant dense<0.000000e+00> : vector<8x128xf32>
    %21 = tpu.matmul %19, %20, %cst_13 {dimension_numbers = #tpu.dot_dimension_numbers<[1], [0], [0], [1], [0, 0, 1, 1], [], []>} : vector<8x128xf32>, vector<128x128xf32>, vector<8x128xf32> -> vector<8x128xf32>
    %22 = vector.shape_cast %21 : vector<8x128xf32> to vector<8x1x128xf32>
    %cst_14 = arith.constant dense<0xFF800000> : vector<1x128xf32>
    %23 = vector.multi_reduction <maximumf>, %22, %cst_14 [0] : vector<8x1x128xf32> to vector<1x128xf32>
    %24 = vector.shape_cast %23 : vector<1x128xf32> to vector<1x1x128xf32>
    %25 = vector.broadcast %24 : vector<1x1x128xf32> to vector<8x1x128xf32>
    %26 = arith.subf %22, %25 : vector<8x1x128xf32>
    %27 = math.exp %26 : vector<8x1x128xf32>
    %cst_15 = arith.constant dense<0.000000e+00> : vector<1x128xf32>
    %28 = vector.multi_reduction <add>, %27, %cst_15 [0] : vector<8x1x128xf32> to vector<1x128xf32>
    %29 = vector.shape_cast %28 : vector<1x128xf32> to vector<1x1x128xf32>
    %30 = tpu.reciprocal %29 {approx = true} : vector<1x1x128xf32> -> vector<1x1x128xf32>
    %31 = arith.mulf %29, %30 : vector<1x1x128xf32>
    %cst_16 = arith.constant 2.000000e+00 : f32
    %32 = vector.broadcast %cst_16 : f32 to vector<1x1x128xf32>
    %33 = arith.subf %32, %31 : vector<1x1x128xf32>
    %34 = arith.mulf %30, %33 : vector<1x1x128xf32>
    %35 = vector.broadcast %34 : vector<1x1x128xf32> to vector<8x1x128xf32>
    %36 = arith.mulf %27, %35 : vector<8x1x128xf32>
    %37 = arith.mulf %36, %15 : vector<8x1x128xf32>
    %cst_17 = arith.constant dense<0.000000e+00> : vector<1x128xf32>
    %38 = vector.multi_reduction <add>, %37, %cst_17 [0] : vector<8x1x128xf32> to vector<1x128xf32>
    %c0_18 = arith.constant 0 : index
    %c384 = arith.constant 384 : index
    %39 = vector.load %arg3[%c0_18, %c384] : memref<128x640xf32, #tpu.memory_space<vmem>>, vector<128x128xf32>
    %cst_19 = arith.constant dense<0.000000e+00> : vector<1x128xf32>
    %40 = tpu.matmul %38, %39, %cst_19 {dimension_numbers = #tpu.dot_dimension_numbers<[1], [0], [0], [1], [0, 0, 1, 1], [], []>} : vector<1x128xf32>, vector<128x128xf32>, vector<1x128xf32> -> vector<1x128xf32>
    %c0_20 = arith.constant 0 : index
    %c384_21 = arith.constant 384 : index
    %41 = vector.load %arg4[%c0_20, %c384_21] : memref<1x512xf32, #tpu.memory_space<vmem>>, vector<1x128xf32>
    %42 = arith.addf %40, %41 : vector<1x128xf32>
    %c0_22 = arith.constant 0 : index
    %c0_23 = arith.constant 0 : index
    %43 = vector.load %arg5[%c0_22, %c0_23] : memref<1x128xf32, #tpu.memory_space<vmem>>, vector<1x128xf32>
    tpu.vector_store %arg5[%c0_22, %c0_23], %42 {strides = array<i32>} : memref<1x128xf32, #tpu.memory_space<vmem>>, vector<1x128xf32>,
    return
  }
  func.func @transform_0(%arg0: i32) -> (i32, i32) {
    %c0_i32 = arith.constant 0 : i32
    %c0_i32_0 = arith.constant 0 : i32
    return %arg0, %c0_i32 : i32, i32
  }
  func.func @transform_1(%arg0: i32) -> (i32, i32, i32) {
    %c0_i32 = arith.constant 0 : i32
    %c0_i32_0 = arith.constant 0 : i32
    %c0_i32_1 = arith.constant 0 : i32
    return %c0_i32, %arg0, %c0_i32_0 : i32, i32, i32
  }
  func.func @transform_2(%arg0: i32) -> (i32, i32) {
    %c0_i32 = arith.constant 0 : i32
    %c0_i32_0 = arith.constant 0 : i32
    %c0_i32_1 = arith.constant 0 : i32
    return %c0_i32, %c0_i32_0 : i32, i32
  }
  func.func @transform_3(%arg0: i32) -> (i32, i32) {
    %c0_i32 = arith.constant 0 : i32
    %c0_i32_0 = arith.constant 0 : i32
    %c0_i32_1 = arith.constant 0 : i32
    return %c0_i32, %c0_i32_0 : i32, i32
  }
  func.func @transform_4(%arg0: i32) -> (i32, i32) {
    %c0_i32 = arith.constant 0 : i32
    %c0_i32_0 = arith.constant 0 : i32
    return %arg0, %c0_i32 : i32, i32
  }
}

</mosaic_0001>

<llo_original>
// kernel: tpu_custom_call.1
$region0: #{tpu_custom_call.1}
  #allocation0 [shape = 'u32[]', space=smem, size = 0x4, offset = 0x4, fixed_abs, tag = 'smem constant byte address 0x4 - core index']
  #allocation1 [shape = 'u32[72,128]{1,0:T(1,128)}', space=vmem, size = 0x9000, scoped, tag = 'internal scratch']
  %s0 = inlined_call_operand.hbm [shape: f32[1,128], index: 0, kind: input, shape index: {}]
  %s1 = inlined_call_operand.hbm [shape: f32[8,1,128], index: 1, kind: input, shape index: {}]
  %s2 = inlined_call_operand.hbm [shape: f32[128,640], index: 2, kind: input, shape index: {}]
  %s3 = inlined_call_operand.hbm [shape: f32[1,512], index: 3, kind: input, shape index: {}]
  %s4 = inlined_call_operand.hbm [shape: f32[1,128], index: 4, kind: output, shape index: {}]
  %s5 = sld [smem:[#allocation0]]
  $region42: #{tpu_custom_call.1} parent=0
    _
  %s7 = ssub.s32 1, %s5
  %s8 = scalar_select 0, %s7, %s5
  $region1: #{tpu_custom_call.1} parent=0
    #allocation2 [shape = 'u8[512]{0}', space=vmem, size = 0x400, scoped, tag = 'input window, operand 0, single buffered']
    #allocation3 [shape = 's32[1]{0}', space=sflag, size = 0x4, scoped, tag = 'scoped memory for tpu_custom_call.1']
    #allocation4 [shape = 's32[1]{0}', space=sflag, size = 0x4, scoped, tag = 'scoped memory for tpu_custom_call.1']
    #allocation5 [shape = 'u8[4096]{0}', space=vmem, size = 0x1000, scoped, tag = 'input window, operand 1, single buffered']
    #allocation6 [shape = 's32[1]{0}', space=sflag, size = 0x4, scoped, tag = 'scoped memory for tpu_custom_call.1']
    #allocation7 [shape = 'u8[327680]{0}', space=vmem, size = 0x50000, scoped, tag = 'input window, operand 2, single buffered']
    #allocation8 [shape = 'u8[2048]{0}', space=vmem, size = 0x800, scoped, tag = 'input window, operand 3, single buffered']
    #allocation9 [shape = 's32[1]{0}', space=sflag, size = 0x4, scoped, tag = 'scoped memory for tpu_custom_call.1']
    #allocation10 [shape = 'u8[512]{0}', space=vmem, size = 0x400, scoped, tag = 'output window, operand 0, single buffered']
    %9 = vsyncpa [#allocation3], 0
    %10 = vsyncpa [#allocation6], 0
    %11 = vsyncpa [#allocation9], 0
    %12 = vsyncpa [#allocation4], 0
    // Predicated region
    $region2: #{tpu_custom_call.1} parent=1 // pred_check
      _
    $region3: #{tpu_custom_call.1} parent=1 // pred_check_branch
      %14 = sbr.rel (0) target = $region5
    $region4: #{tpu_custom_call.1} parent=1 // pred_region
      %16 = vsyncadd [#allocation3], 0
      %s18 = sshll.u32 %s0, 4
      %s19 = int_to_ptr.hbm [resolvable:$true] %s18
      %s20 = sshll.u32 [#allocation2], 4
      %s21 = int_to_ptr.vmem [resolvable:$true] %s20
      %23 = dma.hbm_to_vmem [thread:$0]  %s19, 16, %s21, [#allocation3]
    $region5: #{tpu_custom_call.1} parent=1 // pred_fallthru
      _
    // Predicated region
    $region6: #{tpu_custom_call.1} parent=1 // pred_check
      _
    $region7: #{tpu_custom_call.1} parent=1 // pred_check_branch
      %25 = sbr.rel (0) target = $region9
    $region8: #{tpu_custom_call.1} parent=1 // pred_region
      %27 = vsyncadd [#allocation6], 0
      %s28 = sshll.u32 %s1, 4
      %s29 = int_to_ptr.hbm [resolvable:$true] %s28
      %s30 = sshll.u32 [#allocation5], 4
      %s31 = int_to_ptr.vmem [resolvable:$true] %s30
      %36 = dma.hbm_to_vmem [thread:$0]  %s29, 128, %s31, [#allocation6], 16, 16, 1
    $region9: #{tpu_custom_call.1} parent=1 // pred_fallthru
      _
    // Predicated region
    $region10: #{tpu_custom_call.1} parent=1 // pred_check
      _
    $region11: #{tpu_custom_call.1} parent=1 // pred_check_branch
      %38 = sbr.rel (0) target = $region13
    $region12: #{tpu_custom_call.1} parent=1 // pred_region
      %40 = vsyncadd [#allocation6], 0
      %s41 = sshll.u32 %s2, 4
      %s42 = int_to_ptr.hbm [resolvable:$true] %s41
      %s43 = sshll.u32 [#allocation7], 4
      %s44 = int_to_ptr.vmem [resolvable:$true] %s43
      %49 = dma.hbm_to_vmem [thread:$0]  %s42, 10240, %s44, [#allocation6], 640, 640, 40
    $region13: #{tpu_custom_call.1} parent=1 // pred_fallthru
      _
    // Predicated region
    $region14: #{tpu_custom_call.1} parent=1 // pred_check
      _
    $region15: #{tpu_custom_call.1} parent=1 // pred_check_branch
      %51 = sbr.rel (0) target = $region17
    $region16: #{tpu_custom_call.1} parent=1 // pred_region
      %53 = vsyncadd [#allocation9], 0
      %s55 = sshll.u32 %s3, 4
      %s56 = int_to_ptr.hbm [resolvable:$true] %s55
      %s57 = sshll.u32 [#allocation8], 4
      %s58 = int_to_ptr.vmem [resolvable:$true] %s57
      %60 = dma.hbm_to_vmem [thread:$0]  %s56, 64, %s58, [#allocation9]
    $region17: #{tpu_custom_call.1} parent=1 // pred_fallthru
      _
    // Predicated region
    $region18: #{tpu_custom_call.1} parent=1 // pred_check
      _
    $region19: #{tpu_custom_call.1} parent=1 // pred_check_branch
      %62 = sbr.rel (0) target = $region21
    $region20: #{tpu_custom_call.1} parent=1 // pred_region
      %64 = dma.done [#allocation3], 16
    $region21: #{tpu_custom_call.1} parent=1 // pred_fallthru
      _
    // Predicated region
    $region22: #{tpu_custom_call.1} parent=1 // pred_check
      _
    $region23: #{tpu_custom_call.1} parent=1 // pred_check_branch
      %66 = sbr.rel (0) target = $region25
    $region24: #{tpu_custom_call.1} parent=1 // pred_region
      %68 = dma.done [#allocation6], 128
    $region25: #{tpu_custom_call.1} parent=1 // pred_fallthru
      _
    // Predicated region
    $region26: #{tpu_custom_call.1} parent=1 // pred_check
      _
    $region27: #{tpu_custom_call.1} parent=1 // pred_check_branch
      %70 = sbr.rel (0) target = $region29
    $region28: #{tpu_custom_call.1} parent=1 // pred_region
      %72 = dma.done [#allocation6], 10240
    $region29: #{tpu_custom_call.1} parent=1 // pred_fallthru
      _
    // Predicated region
    $region30: #{tpu_custom_call.1} parent=1 // pred_check
      _
    $region31: #{tpu_custom_call.1} parent=1 // pred_check_branch
      %74 = sbr.rel (0) target = $region33
    $region32: #{tpu_custom_call.1} parent=1 // pred_region
      %76 = dma.done [#allocation9], 64
    $region33: #{tpu_custom_call.1} parent=1 // pred_fallthru
      _
    %v77 = vld [vmem:[#allocation2] sm:$0x1]
    %v78 = vld [vmem:[#allocation5] sm:$0x1]
    %v79 = vld [vmem:[#allocation5 + $0x1] sm:$0x1]
    %v80 = vld [vmem:[#allocation5 + $0x2] sm:$0x1]
    %v81 = vld [vmem:[#allocation5 + $0x3] sm:$0x1]
    %v82 = vld [vmem:[#allocation5 + $0x4] sm:$0x1]
    %v83 = vld [vmem:[#allocation5 + $0x5] sm:$0x1]
    %v84 = vld [vmem:[#allocation5 + $0x6] sm:$0x1]
    %v85 = vld [vmem:[#allocation5 + $0x7] sm:$0x1]
    %v86 = vld [vmem:[#allocation7] sm:$0xff]
    %v87 = vld [vmem:[#allocation7 + $0x28] sm:$0xff]
    %v88 = vld [vmem:[#allocation7 + $0x50] sm:$0xff]
    %v89 = vld [vmem:[#allocation7 + $0x78] sm:$0xff]
    %v90 = vld [vmem:[#allocation7 + $0xa0] sm:$0xff]
    %v91 = vld [vmem:[#allocation7 + $0xc8] sm:$0xff]
    %v92 = vld [vmem:[#allocation7 + $0xf0] sm:$0xff]
    %v93 = vld [vmem:[#allocation7 + $0x118] sm:$0xff]
    %v94 = vld [vmem:[#allocation7 + $0x140] sm:$0xff]
    %v95 = vld [vmem:[#allocation7 + $0x168] sm:$0xff]
    %v96 = vld [vmem:[#allocation7 + $0x190] sm:$0xff]
    %v97 = vld [vmem:[#allocation7 + $0x1b8] sm:$0xff]
    %v98 = vld [vmem:[#allocation7 + $0x1e0] sm:$0xff]
    %v99 = vld [vmem:[#allocation7 + $0x208] sm:$0xff]
    %v100 = vld [vmem:[#allocation7 + $0x230] sm:$0xff]
    %v101 = vld [vmem:[#allocation7 + $0x258] sm:$0xff]
    %v102 = vld [vmem:[#allocation8] sm:$0x1]
    %103 = vmatpush.msra.mxu0 %v101
    %104 = vmatpush.msra.mxu0 %v100
    %105 = vmatpush.msra.mxu0 %v99
    %106 = vmatpush.msra.mxu0 %v98
    %107 = vmatpush.msra.mxu0 %v97
    %108 = vmatpush.msra.mxu0 %v96
    %109 = vmatpush.msra.mxu0 %v95
    %110 = vmatpush.msra.mxu0 %v94
    %111 = vmatpush.msra.mxu0 %v93
    %112 = vmatpush.msra.mxu0 %v92
    %113 = vmatpush.msra.mxu0 %v91
    %114 = vmatpush.msra.mxu0 %v90
    %115 = vmatpush.msra.mxu0 %v89
    %116 = vmatpush.msra.mxu0 %v88
    %117 = vmatpush.msra.mxu0 %v87
    %118 = vmatpush.msra.mxu0 %v86
    %119 = vmatmul.f32.gmra.mxu0 %v77
    %v120 = vpop.f32.mrf.mxu0
    %v121 = vadd.f32 %v102, %v120
    %122 = vdwg.mxu0
    %v123 = vld [vmem:[#allocation7 + $0x8] sm:$0xff]
    %v124 = vld [vmem:[#allocation7 + $0x10] sm:$0xff]
    %v125 = vld [vmem:[#allocation7 + $0x30] sm:$0xff]
    %v126 = vld [vmem:[#allocation7 + $0x38] sm:$0xff]
    %v127 = vld [vmem:[#allocation7 + $0x58] sm:$0xff]
    %v128 = vld [vmem:[#allocation7 + $0x60] sm:$0xff]
    %v129 = vld [vmem:[#allocation7 + $0x80] sm:$0xff]
    %v130 = vld [vmem:[#allocation7 + $0x88] sm:$0xff]
    %v131 = vld [vmem:[#allocation7 + $0xa8] sm:$0xff]
    %v132 = vld [vmem:[#allocation7 + $0xb0] sm:$0xff]
    %v133 = vld [vmem:[#allocation7 + $0xd0] sm:$0xff]
    %v134 = vld [vmem:[#allocation7 + $0xd8] sm:$0xff]
    %v135 = vld [vmem:[#allocation7 + $0xf8] sm:$0xff]
    %v136 = vld [vmem:[#allocation7 + $0x100] sm:$0xff]
    %v137 = vld [vmem:[#allocation7 + $0x120] sm:$0xff]
    %v138 = vld [vmem:[#allocation7 + $0x128] sm:$0xff]
    %v139 = vld [vmem:[#allocation7 + $0x148] sm:$0xff]
    %v140 = vld [vmem:[#allocation7 + $0x150] sm:$0xff]
    %v141 = vld [vmem:[#allocation7 + $0x170] sm:$0xff]
    %v142 = vld [vmem:[#allocation7 + $0x178] sm:$0xff]
    %v143 = vld [vmem:[#allocation7 + $0x198] sm:$0xff]
    %v144 = vld [vmem:[#allocation7 + $0x1a0] sm:$0xff]
    %v145 = vld [vmem:[#allocation7 + $0x1c0] sm:$0xff]
    %v146 = vld [vmem:[#allocation7 + $0x1c8] sm:$0xff]
    %v147 = vld [vmem:[#allocation7 + $0x1e8] sm:$0xff]
    %v148 = vld [vmem:[#allocation7 + $0x1f0] sm:$0xff]
    %v149 = vld [vmem:[#allocation7 + $0x210] sm:$0xff]
    %v150 = vld [vmem:[#allocation7 + $0x218] sm:$0xff]
    %v151 = vld [vmem:[#allocation7 + $0x238] sm:$0xff]
    %v152 = vld [vmem:[#allocation7 + $0x240] sm:$0xff]
    %v153 = vld [vmem:[#allocation7 + $0x260] sm:$0xff]
    %v154 = vld [vmem:[#allocation7 + $0x268] sm:$0xff]
    %v155 = vld [vmem:[#allocation8 + $0x1] sm:$0x3]
    %v157 = vperm.slane %v155, 0
    %v158 = vperm.slane %v155, 1
    %169 = vst [vmem:[#allocation1] ss:$9 sm:$0xff] %v78
    %s170 = scalar_lea.vmem [#allocation1], 1
    %171 = vst [vmem:[%s170] ss:$9 sm:$0xff] %v79
    %s172 = scalar_lea.vmem [#allocation1], 2
    %173 = vst [vmem:[%s172] ss:$9 sm:$0xff] %v80
    %s174 = scalar_lea.vmem [#allocation1], 3
    %175 = vst [vmem:[%s174] ss:$9 sm:$0xff] %v81
    %s176 = scalar_lea.vmem [#allocation1], 4
    %177 = vst [vmem:[%s176] ss:$9 sm:$0xff] %v82
    %s178 = scalar_lea.vmem [#allocation1], 5
    %179 = vst [vmem:[%s178] ss:$9 sm:$0xff] %v83
    %s180 = scalar_lea.vmem [#allocation1], 6
    %181 = vst [vmem:[%s180] ss:$9 sm:$0xff] %v84
    %s182 = scalar_lea.vmem [#allocation1], 7
    %183 = vst [vmem:[%s182] ss:$9 sm:$0xff] %v85
    %v184 = vld [vmem:[#allocation1] sm:$0xff]
    %186 = vmatpush.msra.mxu0 %v153
    %187 = vmatpush.msra.mxu0 %v151
    %188 = vmatpush.msra.mxu0 %v149
    %189 = vmatpush.msra.mxu0 %v147
    %190 = vmatpush.msra.mxu0 %v145
    %191 = vmatpush.msra.mxu0 %v143
    %192 = vmatpush.msra.mxu0 %v141
    %193 = vmatpush.msra.mxu0 %v139
    %194 = vmatpush.msra.mxu0 %v137
    %195 = vmatpush.msra.mxu0 %v135
    %196 = vmatpush.msra.mxu0 %v133
    %197 = vmatpush.msra.mxu0 %v131
    %198 = vmatpush.msra.mxu0 %v129
    %199 = vmatpush.msra.mxu0 %v127
    %200 = vmatpush.msra.mxu0 %v125
    %201 = vmatpush.msra.mxu0 %v123
    %202 = vmatmul.f32.gmra.mxu0 %v184
    %v203 = vpop.f32.mrf.mxu0
    %v204 = vadd.f32 %v157, %v203
    %205 = vdwg.mxu0
    %206 = vmatpush.msra.mxu0 %v154
    %207 = vmatpush.msra.mxu0 %v152
    %208 = vmatpush.msra.mxu0 %v150
    %209 = vmatpush.msra.mxu0 %v148
    %210 = vmatpush.msra.mxu0 %v146
    %211 = vmatpush.msra.mxu0 %v144
    %212 = vmatpush.msra.mxu0 %v142
    %213 = vmatpush.msra.mxu0 %v140
    %214 = vmatpush.msra.mxu0 %v138
    %215 = vmatpush.msra.mxu0 %v136
    %216 = vmatpush.msra.mxu0 %v134
    %217 = vmatpush.msra.mxu0 %v132
    %218 = vmatpush.msra.mxu0 %v130
    %219 = vmatpush.msra.mxu0 %v128
    %220 = vmatpush.msra.mxu0 %v126
    %221 = vmatpush.msra.mxu0 %v124
    %222 = vmatmul.f32.gmra.mxu0 %v184
    %v223 = vpop.f32.mrf.mxu0
    %v224 = vadd.f32 %v158, %v223
    %225 = vdwg.mxu0
    %v227 = vrot.slane %v204, 1
    %v228 = vrot.slane %v204, 2
    %v229 = vrot.slane %v204, 3
    %v230 = vrot.slane %v204, 4
    %v231 = vrot.slane %v204, 5
    %v232 = vrot.slane %v204, 6
    %v233 = vrot.slane %v204, 7
    %v242 = vrot.slane %v224, 1
    %v243 = vrot.slane %v224, 2
    %v244 = vrot.slane %v224, 3
    %v245 = vrot.slane %v224, 4
    %v246 = vrot.slane %v224, 5
    %v247 = vrot.slane %v224, 6
    %v248 = vrot.slane %v224, 7
    %v256 = vmul.f32 %v121, %v204
    %v257 = vmul.f32 %v121, %v227
    %v258 = vmul.f32 %v121, %v228
    %v259 = vmul.f32 %v121, %v229
    %v260 = vmul.f32 %v121, %v230
    %v261 = vmul.f32 %v121, %v231
    %v262 = vmul.f32 %v121, %v232
    %v263 = vmul.f32 %v121, %v233
    %v264 = vld [vmem:[#allocation7 + $0x20] sm:$0xff]
    %v265 = vld [vmem:[#allocation7 + $0x48] sm:$0xff]
    %v266 = vld [vmem:[#allocation7 + $0x70] sm:$0xff]
    %v267 = vld [vmem:[#allocation7 + $0x98] sm:$0xff]
    %v268 = vld [vmem:[#allocation7 + $0xc0] sm:$0xff]
    %v269 = vld [vmem:[#allocation7 + $0xe8] sm:$0xff]
    %v270 = vld [vmem:[#allocation7 + $0x110] sm:$0xff]
    %v271 = vld [vmem:[#allocation7 + $0x138] sm:$0xff]
    %v272 = vld [vmem:[#allocation7 + $0x160] sm:$0xff]
    %v273 = vld [vmem:[#allocation7 + $0x188] sm:$0xff]
    %v274 = vld [vmem:[#allocation7 + $0x1b0] sm:$0xff]
    %v275 = vld [vmem:[#allocation7 + $0x1d8] sm:$0xff]
    %v276 = vld [vmem:[#allocation7 + $0x200] sm:$0xff]
    %v277 = vld [vmem:[#allocation7 + $0x228] sm:$0xff]
    %v278 = vld [vmem:[#allocation7 + $0x250] sm:$0xff]
    %v279 = vld [vmem:[#allocation7 + $0x278] sm:$0xff]
    %v288 = vrot.slane %v257, 7
    %vm289 = vcmask 1041409
    %v290 = vsel %vm289, %v288, %v256
    %v291 = vrot.slane %v258, 6
    %vm292 = vcmask 1042434
    %v293 = vsel %vm292, %v291, %v290
    %v294 = vrot.slane %v259, 5
    %vm295 = vcmask 1043459
    %v296 = vsel %vm295, %v294, %v293
    %v297 = vrot.slane %v260, 4
    %vm298 = vcmask 1044484
    %v299 = vsel %vm298, %v297, %v296
    %v300 = vrot.slane %v261, 3
    %vm301 = vcmask 1045509
    %v302 = vsel %vm301, %v300, %v299
    %v303 = vrot.slane %v262, 2
    %vm304 = vcmask 1046534
    %v305 = vsel %vm304, %v303, %v302
    %v306 = vrot.slane %v263, 1
    %vm307 = vcmask 1047559
    %v308 = vsel %vm307, %v306, %v305
    %310 = vmatpush.msra.mxu0 %v279
    %311 = vmatpush.msra.mxu0 %v278
    %312 = vmatpush.msra.mxu0 %v277
    %313 = vmatpush.msra.mxu0 %v276
    %314 = vmatpush.msra.mxu0 %v275
    %315 = vmatpush.msra.mxu0 %v274
    %316 = vmatpush.msra.mxu0 %v273
    %317 = vmatpush.msra.mxu0 %v272
    %318 = vmatpush.msra.mxu0 %v271
    %319 = vmatpush.msra.mxu0 %v270
    %320 = vmatpush.msra.mxu0 %v269
    %321 = vmatpush.msra.mxu0 %v268
    %322 = vmatpush.msra.mxu0 %v267
    %323 = vmatpush.msra.mxu0 %v266
    %324 = vmatpush.msra.mxu0 %v265
    %325 = vmatpush.msra.mxu0 %v264
    %326 = vmatmul.f32.gmra.mxu0 %v308
    %v327 = vpop.f32.mrf.mxu0
    %v328 = vadd.f32 0.0, %v327
    %329 = vdwg.mxu0
    %v331 = vrot.slane %v328, 1
    %v332 = vrot.slane %v328, 2
    %v333 = vrot.slane %v328, 3
    %v334 = vrot.slane %v328, 4
    %v335 = vrot.slane %v328, 5
    %v336 = vrot.slane %v328, 6
    %v337 = vrot.slane %v328, 7
    %v345 = vlaneseq
    %vm346 = vcmp.ge.s32.totalorder %v345, 0
    %vm347 = vcmp.lt.s32.totalorder %v345, 128
    %vm348 = vmand %vm346, %vm347
    %v349 = vsel %vm348, %v328, -inf
    %v350 = vsel %vm348, %v331, -inf
    %v351 = vsel %vm348, %v332, -inf
    %v352 = vsel %vm348, %v333, -inf
    %v353 = vsel %vm348, %v334, -inf
    %v354 = vmax.f32 %v349, %v353
    %v355 = vsel %vm348, %v335, -inf
    %v356 = vmax.f32 %v350, %v355
    %v357 = vsel %vm348, %v336, -inf
    %v358 = vmax.f32 %v351, %v357
    %v359 = vsel %vm348, %v337, -inf
    %v360 = vmax.f32 %v352, %v359
    %v361 = vmax.f32 %v354, %v356
    %v362 = vmax.f32 %v358, %v360
    %v363 = vmax.f32 %v361, %v362
    %v364 = vsub.f32 %v328, %v363
    %v365 = vsub.f32 %v331, %v363
    %v366 = vsub.f32 %v332, %v363
    %v367 = vsub.f32 %v333, %v363
    %v368 = vsub.f32 %v334, %v363
    %v369 = vsub.f32 %v335, %v363
    %v370 = vsub.f32 %v336, %v363
    %v371 = vsub.f32 %v337, %v363
    %v372 = vmul.f32 %v364, 1.442695
    %v373 = vpow.pop %v372
    %v374 = vmul.f32 %v365, 1.442695
    %v375 = vpow.pop %v374
    %v376 = vmul.f32 %v366, 1.442695
    %v377 = vpow.pop %v376
    %v378 = vmul.f32 %v367, 1.442695
    %v379 = vpow.pop %v378
    %v380 = vmul.f32 %v368, 1.442695
    %v381 = vpow.pop %v380
    %v382 = vmul.f32 %v369, 1.442695
    %v383 = vpow.pop %v382
    %v384 = vmul.f32 %v370, 1.442695
    %v385 = vpow.pop %v384
    %v386 = vmul.f32 %v371, 1.442695
    %v387 = vpow.pop %v386
    %vm388 = vcmask 1040384
    %v389 = vsel %vm388, %v373, 0.0
    %v390 = vsel %vm388, %v375, 0.0
    %v391 = vadd.f32 %v389, %v390
    %v392 = vsel %vm388, %v377, 0.0
    %v393 = vadd.f32 %v391, %v392
    %v394 = vsel %vm388, %v379, 0.0
    %v395 = vadd.f32 %v393, %v394
    %v396 = vsel %vm388, %v381, 0.0
    %v397 = vadd.f32 %v395, %v396
    %v398 = vsel %vm388, %v383, 0.0
    %v399 = vadd.f32 %v397, %v398
    %v400 = vsel %vm388, %v385, 0.0
    %v401 = vadd.f32 %v399, %v400
    %v402 = vsel %vm388, %v387, 0.0
    %v403 = vadd.f32 %v401, %v402
    %v404 = vrcp.pop %v403
    %v405 = vmul.f32 %v403, %v404
    %v406 = vsub.f32 2.0, %v405
    %v407 = vmul.f32 %v404, %v406
    %v408 = vmul.f32 %v373, %v407
    %v409 = vmul.f32 %v375, %v407
    %v410 = vmul.f32 %v377, %v407
    %v411 = vmul.f32 %v379, %v407
    %v412 = vmul.f32 %v381, %v407
    %v413 = vmul.f32 %v383, %v407
    %v414 = vmul.f32 %v385, %v407
    %v415 = vmul.f32 %v387, %v407
    %v416 = vmul.f32 %v408, %v224
    %v417 = vmul.f32 %v409, %v242
    %v418 = vmul.f32 %v410, %v243
    %v419 = vmul.f32 %v411, %v244
    %v420 = vmul.f32 %v412, %v245
    %v421 = vmul.f32 %v413, %v246
    %v422 = vmul.f32 %v414, %v247
    %v423 = vmul.f32 %v415, %v248
    %v424 = vsel %vm388, %v416, 0.0
    %v425 = vsel %vm388, %v417, 0.0
    %v426 = vadd.f32 %v424, %v425
    %v427 = vsel %vm388, %v418, 0.0
    %v428 = vadd.f32 %v426, %v427
    %v429 = vsel %vm388, %v419, 0.0
    %v430 = vadd.f32 %v428, %v429
    %v431 = vsel %vm388, %v420, 0.0
    %v432 = vadd.f32 %v430, %v431
    %v433 = vsel %vm388, %v421, 0.0
    %v434 = vadd.f32 %v432, %v433
    %v435 = vsel %vm388, %v422, 0.0
    %v436 = vadd.f32 %v434, %v435
    %v437 = vsel %vm388, %v423, 0.0
    %v438 = vadd.f32 %v436, %v437
    %v439 = vld [vmem:[#allocation7 + $0x18] sm:$0xff]
    %v440 = vld [vmem:[#allocation7 + $0x40] sm:$0xff]
    %v441 = vld [vmem:[#allocation7 + $0x68] sm:$0xff]
    %v442 = vld [vmem:[#allocation7 + $0x90] sm:$0xff]
    %v443 = vld [vmem:[#allocation7 + $0xb8] sm:$0xff]
    %v444 = vld [vmem:[#allocation7 + $0xe0] sm:$0xff]
    %v445 = vld [vmem:[#allocation7 + $0x108] sm:$0xff]
    %v446 = vld [vmem:[#allocation7 + $0x130] sm:$0xff]
    %v447 = vld [vmem:[#allocation7 + $0x158] sm:$0xff]
    %v448 = vld [vmem:[#allocation7 + $0x180] sm:$0xff]
    %v449 = vld [vmem:[#allocation7 + $0x1a8] sm:$0xff]
    %v450 = vld [vmem:[#allocation7 + $0x1d0] sm:$0xff]
    %v451 = vld [vmem:[#allocation7 + $0x1f8] sm:$0xff]
    %v452 = vld [vmem:[#allocation7 + $0x220] sm:$0xff]
    %v453 = vld [vmem:[#allocation7 + $0x248] sm:$0xff]
    %v454 = vld [vmem:[#allocation7 + $0x270] sm:$0xff]
    %v455 = vld [vmem:[#allocation8 + $0x3] sm:$0x1]
    %456 = vmatpush.msra.mxu0 %v454
    %457 = vmatpush.msra.mxu0 %v453
    %458 = vmatpush.msra.mxu0 %v452
    %459 = vmatpush.msra.mxu0 %v451
    %460 = vmatpush.msra.mxu0 %v450
    %461 = vmatpush.msra.mxu0 %v449
    %462 = vmatpush.msra.mxu0 %v448
    %463 = vmatpush.msra.mxu0 %v447
    %464 = vmatpush.msra.mxu0 %v446
    %465 = vmatpush.msra.mxu0 %v445
    %466 = vmatpush.msra.mxu0 %v444
    %467 = vmatpush.msra.mxu0 %v443
    %468 = vmatpush.msra.mxu0 %v442
    %469 = vmatpush.msra.mxu0 %v441
    %470 = vmatpush.msra.mxu0 %v440
    %471 = vmatpush.msra.mxu0 %v439
    %472 = vmatmul.f32.gmra.mxu0 %v438
    %v473 = vpop.f32.mrf.mxu0
    %v474 = vadd.f32 %v455, %v473
    %475 = vdwg.mxu0
    %476 = vst [vmem:[#allocation10] sm:$0x1] %v474
    // Predicated region
    $region34: #{tpu_custom_call.1} parent=1 // pred_check
      _
    $region35: #{tpu_custom_call.1} parent=1 // pred_check_branch
      %478 = sbr.rel (0) target = $region37
    $region36: #{tpu_custom_call.1} parent=1 // pred_region
      %480 = vsyncadd [#allocation4], 0
      %s482 = sshll.u32 [#allocation10], 4
      %s483 = int_to_ptr.vmem [resolvable:$true] %s482
      %s484 = sshll.u32 %s4, 4
      %s485 = int_to_ptr.hbm [resolvable:$true] %s484
      %487 = dma.vmem_to_hbm [thread:$0]  %s483, 16, %s485, [#allocation4]
    $region37: #{tpu_custom_call.1} parent=1 // pred_fallthru
      _
    // Predicated region
    $region38: #{tpu_custom_call.1} parent=1 // pred_check
      _
    $region39: #{tpu_custom_call.1} parent=1 // pred_check_branch
      %489 = sbr.rel (0) target = $region41
    $region40: #{tpu_custom_call.1} parent=1 // pred_region
      %491 = dma.done [#allocation4], 16
    $region41: #{tpu_custom_call.1} parent=1 // pred_fallthru
      _
    %492 = vsyncpa [#allocation3], 1
    %493 = vsyncpa [#allocation6], 1
    %494 = vsyncpa [#allocation9], 1
    %495 = vsyncpa [#allocation4], 1

</llo_original>
